<compile_context>
chip_gen: v5e
topology: v5e:2x2
jax: 0.10.0
libtpu: 0.0.40
codegen_flags: <defaults>
</compile_context>

<pallas_src>
import jax
import jax.numpy as jnp
from jax.experimental import pallas as pl
from jax.experimental.pallas import tpu as pltpu

_LANES = 128
_SUBLANES = 8


def _make_kernel(input_dim, hidden_dim):
    def kernel(w1_ref, b1_ref, w2_ref, b2_ref, x_ref, o_ref):
        # x_ref : (input_dim, block_rows, 128) VMEM   o_ref : (block_rows, 128) VMEM
        # w1_ref: (input_dim, hidden) SMEM            b1_ref: (hidden,) SMEM
        # w2_ref: (hidden,) SMEM                      b2_ref: (1,) SMEM
        xs = [x_ref[c] for c in range(input_dim)]      # lane-dense channel slabs
        acc = None
        for j in range(hidden_dim):                    # unrolled scalar-broadcast FMAs (VPU)
            z = xs[0] * w1_ref[0, j]
            for c in range(1, input_dim):
                z = z + xs[c] * w1_ref[c, j]
            h = jnp.maximum(z + b1_ref[j], 0.0)        # ReLU
            t = h * w2_ref[j]
            acc = t if acc is None else acc + t
        o_ref[...] = jax.nn.sigmoid(acc + b2_ref[0])   # sigmoid on the EUP
    return kernel


def seleccionador_forward(x, w1, b1, w2, b2, *, block_rows=512):
    """x: (batch, num_items, input_dim) f32 -> (batch, num_items) f32."""
    batch, num_items, input_dim = x.shape
    hidden_dim = w1.shape[1]
    m = batch * num_items

    # Layout plumbing (wrapper side, XLA): put M on (sublane, lane) and pad up
    # to a whole number of (block_rows, 128) tiles so BlockSpecs are exact.
    rows = -(-m // _LANES)
    rows = max(_SUBLANES, -(-rows // _SUBLANES) * _SUBLANES)
    block_rows = max(_SUBLANES, (min(block_rows, rows) // _SUBLANES) * _SUBLANES)
    rows = -(-rows // block_rows) * block_rows
    m_pad = rows * _LANES

    xf = x.reshape(m, input_dim).astype(jnp.float32)
    xf = jnp.pad(xf, ((0, m_pad - m), (0, 0)))
    x_slab = jnp.transpose(xf).reshape(input_dim, rows, _LANES)

    grid = (rows // block_rows,)
    smem = pl.BlockSpec(memory_space=pltpu.MemorySpace.SMEM)

    out = pl.pallas_call(
        _make_kernel(input_dim, hidden_dim),
        out_shape=jax.ShapeDtypeStruct((rows, _LANES), jnp.float32),
        grid=grid,
        in_specs=[
            smem, smem, smem, smem,  # w1, b1, w2, b2 — tiny, scalar-read from SMEM
            pl.BlockSpec((input_dim, block_rows, _LANES), lambda i: (0, i, 0)),
        ],
        out_specs=pl.BlockSpec((block_rows, _LANES), lambda i: (i, 0)),
        compiler_params=pltpu.CompilerParams(
            dimension_semantics=("parallel",),  # disjoint output tiles -> megacore sharding
        ),
    )(
        w1.astype(jnp.float32),
        b1.astype(jnp.float32),
        w2.astype(jnp.float32),
        b2.astype(jnp.float32),
        x_slab,
    )

    return out.reshape(m_pad)[:m].reshape(batch, num_items)


def init_params(key, input_dim=2, hidden_dim=16):
    """Deterministic synthetic init mimicking nn.Linear's uniform(-1/sqrt(fan_in))."""
    k1, k2, k3, k4 = jax.random.split(key, 4)
    lim1 = 1.0 / jnp.sqrt(input_dim)
    lim2 = 1.0 / jnp.sqrt(hidden_dim)
    # Stored as (in_features, out_features); fc2 weight/bias flattened for SMEM scalar reads.
    w1 = jax.random.uniform(k1, (input_dim, hidden_dim), jnp.float32, -lim1, lim1)
    b1 = jax.random.uniform(k2, (hidden_dim,), jnp.float32, -lim1, lim1)
    w2 = jax.random.uniform(k3, (hidden_dim,), jnp.float32, -lim2, lim2)
    b2 = jax.random.uniform(k4, (1,), jnp.float32, -lim2, lim2)
    return w1, b1, w2, b2


def _reference(x, w1, b1, w2, b2):
    b, n, d = x.shape
    xf = x.reshape(-1, d)
    h = jnp.maximum(xf @ w1 + b1, 0.0)
    y = jax.nn.sigmoid(h @ w2 + b2[0])
    return y.reshape(b, n)


if __name__ == "__main__":
    key = jax.random.PRNGKey(0)
    kx, kp, kx2 = jax.random.split(key, 3)

    batch, num_items, input_dim, hidden_dim = 2, 8, 2, 16
    x = jax.random.uniform(kx, (batch, num_items, input_dim), jnp.float32)
    w1, b1, w2, b2 = init_params(kp, input_dim, hidden_dim)

    y = jax.block_until_ready(seleccionador_forward(x, w1, b1, w2, b2))
    ref = _reference(x, w1, b1, w2, b2)
    assert y.shape == (batch, num_items)
    assert jnp.allclose(y, ref, atol=1e-5, rtol=1e-5), "mismatch vs reference"

    # Also exercise the multi-tile grid path (grid=(4,), tiles of 8x128 rows).
    x2 = jax.random.uniform(kx2, (4, 1000, input_dim), jnp.float32)
    y2 = jax.block_until_ready(
        seleccionador_forward(x2, w1, b1, w2, b2, block_rows=8))
    ref2 = _reference(x2, w1, b1, w2, b2)
    assert jnp.allclose(y2, ref2, atol=1e-5, rtol=1e-5), "mismatch vs reference (tiled)"

    print("KERNEL_OK")
</pallas_src>

<mosaic_0001>
module attributes {stable_mosaic.version = 11 : i64} {
  func.func @kernel(%arg0: i32, %arg1: memref<2x16xf32, #tpu.memory_space<smem>>, %arg2: memref<16xf32, #tpu.memory_space<smem>>, %arg3: memref<16xf32, #tpu.memory_space<smem>>, %arg4: memref<1xf32, #tpu.memory_space<smem>>, %arg5: memref<2x8x128xf32, #tpu.memory_space<vmem>>, %arg6: memref<8x128xf32, #tpu.memory_space<vmem>>) attributes {dimension_semantics = [#tpu.dimension_semantics<parallel>], iteration_bounds = array<i64: 1>, scalar_prefetch = 0 : i64, scratch_operands = 0 : i64, tpu.core_type = #tpu.core_type<tc>, window_params = [{transform_indices = @transform_0, window_bounds = array<i64: 2, 16>}, {transform_indices = @transform_1, window_bounds = array<i64: 16>}, {transform_indices = @transform_2, window_bounds = array<i64: 16>}, {transform_indices = @transform_3, window_bounds = array<i64: 1>}, {transform_indices = @transform_4, window_bounds = array<i64: 2, 8, 128>}, {transform_indices = @transform_5, window_bounds = array<i64: 8, 128>}]} {
    %c0 = arith.constant 0 : index
    %c0_0 = arith.constant 0 : index
    %c0_1 = arith.constant 0 : index
    %0 = vector.load %arg5[%c0, %c0_0, %c0_1] : memref<2x8x128xf32, #tpu.memory_space<vmem>>, vector<1x8x128xf32>
    %1 = vector.shape_cast %0 : vector<1x8x128xf32> to vector<8x128xf32>
    %c1 = arith.constant 1 : index
    %c0_2 = arith.constant 0 : index
    %c0_3 = arith.constant 0 : index
    %2 = vector.load %arg5[%c1, %c0_2, %c0_3] : memref<2x8x128xf32, #tpu.memory_space<vmem>>, vector<1x8x128xf32>
    %3 = vector.shape_cast %2 : vector<1x8x128xf32> to vector<8x128xf32>
    %c0_4 = arith.constant 0 : index
    %c0_5 = arith.constant 0 : index
    %4 = memref.load %arg1[%c0_4, %c0_5] : memref<2x16xf32, #tpu.memory_space<smem>>
    %5 = vector.broadcast %4 : f32 to vector<8x128xf32>
    %6 = arith.mulf %1, %5 : vector<8x128xf32>
    %c1_6 = arith.constant 1 : index
    %c0_7 = arith.constant 0 : index
    %7 = memref.load %arg1[%c1_6, %c0_7] : memref<2x16xf32, #tpu.memory_space<smem>>
    %8 = vector.broadcast %7 : f32 to vector<8x128xf32>
    %9 = arith.mulf %3, %8 : vector<8x128xf32>
    %10 = arith.addf %6, %9 : vector<8x128xf32>
    %c0_8 = arith.constant 0 : index
    %11 = memref.load %arg2[%c0_8] : memref<16xf32, #tpu.memory_space<smem>>
    %12 = vector.broadcast %11 : f32 to vector<8x128xf32>
    %13 = arith.addf %10, %12 : vector<8x128xf32>
    %cst = arith.constant 0.000000e+00 : f32
    %14 = vector.broadcast %cst : f32 to vector<8x128xf32>
    %15 = arith.maximumf %13, %14 : vector<8x128xf32>
    %c0_9 = arith.constant 0 : index
    %16 = memref.load %arg3[%c0_9] : memref<16xf32, #tpu.memory_space<smem>>
    %17 = vector.broadcast %16 : f32 to vector<8x128xf32>
    %18 = arith.mulf %15, %17 : vector<8x128xf32>
    %c0_10 = arith.constant 0 : index
    %c1_11 = arith.constant 1 : index
    %19 = memref.load %arg1[%c0_10, %c1_11] : memref<2x16xf32, #tpu.memory_space<smem>>
    %20 = vector.broadcast %19 : f32 to vector<8x128xf32>
    %21 = arith.mulf %1, %20 : vector<8x128xf32>
    %c1_12 = arith.constant 1 : index
    %c1_13 = arith.constant 1 : index
    %22 = memref.load %arg1[%c1_12, %c1_13] : memref<2x16xf32, #tpu.memory_space<smem>>
    %23 = vector.broadcast %22 : f32 to vector<8x128xf32>
    %24 = arith.mulf %3, %23 : vector<8x128xf32>
    %25 = arith.addf %21, %24 : vector<8x128xf32>
    %c1_14 = arith.constant 1 : index
    %26 = memref.load %arg2[%c1_14] : memref<16xf32, #tpu.memory_space<smem>>
    %27 = vector.broadcast %26 : f32 to vector<8x128xf32>
    %28 = arith.addf %25, %27 : vector<8x128xf32>
    %cst_15 = arith.constant 0.000000e+00 : f32
    %29 = vector.broadcast %cst_15 : f32 to vector<8x128xf32>
    %30 = arith.maximumf %28, %29 : vector<8x128xf32>
    %c1_16 = arith.constant 1 : index
    %31 = memref.load %arg3[%c1_16] : memref<16xf32, #tpu.memory_space<smem>>
    %32 = vector.broadcast %31 : f32 to vector<8x128xf32>
    %33 = arith.mulf %30, %32 : vector<8x128xf32>
    %34 = arith.addf %18, %33 : vector<8x128xf32>
    %c0_17 = arith.constant 0 : index
    %c2 = arith.constant 2 : index
    %35 = memref.load %arg1[%c0_17, %c2] : memref<2x16xf32, #tpu.memory_space<smem>>
    %36 = vector.broadcast %35 : f32 to vector<8x128xf32>
    %37 = arith.mulf %1, %36 : vector<8x128xf32>
    %c1_18 = arith.constant 1 : index
    %c2_19 = arith.constant 2 : index
    %38 = memref.load %arg1[%c1_18, %c2_19] : memref<2x16xf32, #tpu.memory_space<smem>>
    %39 = vector.broadcast %38 : f32 to vector<8x128xf32>
    %40 = arith.mulf %3, %39 : vector<8x128xf32>
    %41 = arith.addf %37, %40 : vector<8x128xf32>
    %c2_20 = arith.constant 2 : index
    %42 = memref.load %arg2[%c2_20] : memref<16xf32, #tpu.memory_space<smem>>
    %43 = vector.broadcast %42 : f32 to vector<8x128xf32>
    %44 = arith.addf %41, %43 : vector<8x128xf32>
    %cst_21 = arith.constant 0.000000e+00 : f32
    %45 = vector.broadcast %cst_21 : f32 to vector<8x128xf32>
    %46 = arith.maximumf %44, %45 : vector<8x128xf32>
    %c2_22 = arith.constant 2 : index
    %47 = memref.load %arg3[%c2_22] : memref<16xf32, #tpu.memory_space<smem>>
    %48 = vector.broadcast %47 : f32 to vector<8x128xf32>
    %49 = arith.mulf %46, %48 : vector<8x128xf32>
    %50 = arith.addf %34, %49 : vector<8x128xf32>
    %c0_23 = arith.constant 0 : index
    %c3 = arith.constant 3 : index
    %51 = memref.load %arg1[%c0_23, %c3] : memref<2x16xf32, #tpu.memory_space<smem>>
    %52 = vector.broadcast %51 : f32 to vector<8x128xf32>
    %53 = arith.mulf %1, %52 : vector<8x128xf32>
    %c1_24 = arith.constant 1 : index
    %c3_25 = arith.constant 3 : index
    %54 = memref.load %arg1[%c1_24, %c3_25] : memref<2x16xf32, #tpu.memory_space<smem>>
    %55 = vector.broadcast %54 : f32 to vector<8x128xf32>
    %56 = arith.mulf %3, %55 : vector<8x128xf32>
    %57 = arith.addf %53, %56 : vector<8x128xf32>
    %c3_26 = arith.constant 3 : index
    %58 = memref.load %arg2[%c3_26] : memref<16xf32, #tpu.memory_space<smem>>
    %59 = vector.broadcast %58 : f32 to vector<8x128xf32>
    %60 = arith.addf %57, %59 : vector<8x128xf32>
    %cst_27 = arith.constant 0.000000e+00 : f32
    %61 = vector.broadcast %cst_27 : f32 to vector<8x128xf32>
    %62 = arith.maximumf %60, %61 : vector<8x128xf32>
    %c3_28 = arith.constant 3 : index
    %63 = memref.load %arg3[%c3_28] : memref<16xf32, #tpu.memory_space<smem>>
    %64 = vector.broadcast %63 : f32 to vector<8x128xf32>
    %65 = arith.mulf %62, %64 : vector<8x128xf32>
    %66 = arith.addf %50, %65 : vector<8x128xf32>
    %c0_29 = arith.constant 0 : index
    %c4 = arith.constant 4 : index
    %67 = memref.load %arg1[%c0_29, %c4] : memref<2x16xf32, #tpu.memory_space<smem>>
    %68 = vector.broadcast %67 : f32 to vector<8x128xf32>
    %69 = arith.mulf %1, %68 : vector<8x128xf32>
    %c1_30 = arith.constant 1 : index
    %c4_31 = arith.constant 4 : index
    %70 = memref.load %arg1[%c1_30, %c4_31] : memref<2x16xf32, #tpu.memory_space<smem>>
    %71 = vector.broadcast %70 : f32 to vector<8x128xf32>
    %72 = arith.mulf %3, %71 : vector<8x128xf32>
    %73 = arith.addf %69, %72 : vector<8x128xf32>
    %c4_32 = arith.constant 4 : index
    %74 = memref.load %arg2[%c4_32] : memref<16xf32, #tpu.memory_space<smem>>
    %75 = vector.broadcast %74 : f32 to vector<8x128xf32>
    %76 = arith.addf %73, %75 : vector<8x128xf32>
    %cst_33 = arith.constant 0.000000e+00 : f32
    %77 = vector.broadcast %cst_33 : f32 to vector<8x128xf32>
    %78 = arith.maximumf %76, %77 : vector<8x128xf32>
    %c4_34 = arith.constant 4 : index
    %79 = memref.load %arg3[%c4_34] : memref<16xf32, #tpu.memory_space<smem>>
    %80 = vector.broadcast %79 : f32 to vector<8x128xf32>
    %81 = arith.mulf %78, %80 : vector<8x128xf32>
    %82 = arith.addf %66, %81 : vector<8x128xf32>
    %c0_35 = arith.constant 0 : index
    %c5 = arith.constant 5 : index
    %83 = memref.load %arg1[%c0_35, %c5] : memref<2x16xf32, #tpu.memory_space<smem>>
    %84 = vector.broadcast %83 : f32 to vector<8x128xf32>
    %85 = arith.mulf %1, %84 : vector<8x128xf32>
    %c1_36 = arith.constant 1 : index
    %c5_37 = arith.constant 5 : index
    %86 = memref.load %arg1[%c1_36, %c5_37] : memref<2x16xf32, #tpu.memory_space<smem>>
    %87 = vector.broadcast %86 : f32 to vector<8x128xf32>
    %88 = arith.mulf %3, %87 : vector<8x128xf32>
    %89 = arith.addf %85, %88 : vector<8x128xf32>
    %c5_38 = arith.constant 5 : index
    %90 = memref.load %arg2[%c5_38] : memref<16xf32, #tpu.memory_space<smem>>
    %91 = vector.broadcast %90 : f32 to vector<8x128xf32>
    %92 = arith.addf %89, %91 : vector<8x128xf32>
    %cst_39 = arith.constant 0.000000e+00 : f32
    %93 = vector.broadcast %cst_39 : f32 to vector<8x128xf32>
    %94 = arith.maximumf %92, %93 : vector<8x128xf32>
    %c5_40 = arith.constant 5 : index
    %95 = memref.load %arg3[%c5_40] : memref<16xf32, #tpu.memory_space<smem>>
    %96 = vector.broadcast %95 : f32 to vector<8x128xf32>
    %97 = arith.mulf %94, %96 : vector<8x128xf32>
    %98 = arith.addf %82, %97 : vector<8x128xf32>
    %c0_41 = arith.constant 0 : index
    %c6 = arith.constant 6 : index
    %99 = memref.load %arg1[%c0_41, %c6] : memref<2x16xf32, #tpu.memory_space<smem>>
    %100 = vector.broadcast %99 : f32 to vector<8x128xf32>
    %101 = arith.mulf %1, %100 : vector<8x128xf32>
    %c1_42 = arith.constant 1 : index
    %c6_43 = arith.constant 6 : index
    %102 = memref.load %arg1[%c1_42, %c6_43] : memref<2x16xf32, #tpu.memory_space<smem>>
    %103 = vector.broadcast %102 : f32 to vector<8x128xf32>
    %104 = arith.mulf %3, %103 : vector<8x128xf32>
    %105 = arith.addf %101, %104 : vector<8x128xf32>
    %c6_44 = arith.constant 6 : index
    %106 = memref.load %arg2[%c6_44] : memref<16xf32, #tpu.memory_space<smem>>
    %107 = vector.broadcast %106 : f32 to vector<8x128xf32>
    %108 = arith.addf %105, %107 : vector<8x128xf32>
    %cst_45 = arith.constant 0.000000e+00 : f32
    %109 = vector.broadcast %cst_45 : f32 to vector<8x128xf32>
    %110 = arith.maximumf %108, %109 : vector<8x128xf32>
    %c6_46 = arith.constant 6 : index
    %111 = memref.load %arg3[%c6_46] : memref<16xf32, #tpu.memory_space<smem>>
    %112 = vector.broadcast %111 : f32 to vector<8x128xf32>
    %113 = arith.mulf %110, %112 : vector<8x128xf32>
    %114 = arith.addf %98, %113 : vector<8x128xf32>
    %c0_47 = arith.constant 0 : index
    %c7 = arith.constant 7 : index
    %115 = memref.load %arg1[%c0_47, %c7] : memref<2x16xf32, #tpu.memory_space<smem>>
    %116 = vector.broadcast %115 : f32 to vector<8x128xf32>
    %117 = arith.mulf %1, %116 : vector<8x128xf32>
    %c1_48 = arith.constant 1 : index
    %c7_49 = arith.constant 7 : index
    %118 = memref.load %arg1[%c1_48, %c7_49] : memref<2x16xf32, #tpu.memory_space<smem>>
    %119 = vector.broadcast %118 : f32 to vector<8x128xf32>
    %120 = arith.mulf %3, %119 : vector<8x128xf32>
    %121 = arith.addf %117, %120 : vector<8x128xf32>
    %c7_50 = arith.constant 7 : index
    %122 = memref.load %arg2[%c7_50] : memref<16xf32, #tpu.memory_space<smem>>
    %123 = vector.broadcast %122 : f32 to vector<8x128xf32>
    %124 = arith.addf %121, %123 : vector<8x128xf32>
    %cst_51 = arith.constant 0.000000e+00 : f32
    %125 = vector.broadcast %cst_51 : f32 to vector<8x128xf32>
    %126 = arith.maximumf %124, %125 : vector<8x128xf32>
    %c7_52 = arith.constant 7 : index
    %127 = memref.load %arg3[%c7_52] : memref<16xf32, #tpu.memory_space<smem>>
    %128 = vector.broadcast %127 : f32 to vector<8x128xf32>
    %129 = arith.mulf %126, %128 : vector<8x128xf32>
    %130 = arith.addf %114, %129 : vector<8x128xf32>
    %c0_53 = arith.constant 0 : index
    %c8 = arith.constant 8 : index
    %131 = memref.load %arg1[%c0_53, %c8] : memref<2x16xf32, #tpu.memory_space<smem>>
    %132 = vector.broadcast %131 : f32 to vector<8x128xf32>
    %133 = arith.mulf %1, %132 : vector<8x128xf32>
    %c1_54 = arith.constant 1 : index
    %c8_55 = arith.constant 8 : index
    %134 = memref.load %arg1[%c1_54, %c8_55] : memref<2x16xf32, #tpu.memory_space<smem>>
    %135 = vector.broadcast %134 : f32 to vector<8x128xf32>
    %136 = arith.mulf %3, %135 : vector<8x128xf32>
    %137 = arith.addf %133, %136 : vector<8x128xf32>
    %c8_56 = arith.constant 8 : index
    %138 = memref.load %arg2[%c8_56] : memref<16xf32, #tpu.memory_space<smem>>
    %139 = vector.broadcast %138 : f32 to vector<8x128xf32>
    %140 = arith.addf %137, %139 : vector<8x128xf32>
    %cst_57 = arith.constant 0.000000e+00 : f32
    %141 = vector.broadcast %cst_57 : f32 to vector<8x128xf32>
    %142 = arith.maximumf %140, %141 : vector<8x128xf32>
    %c8_58 = arith.constant 8 : index
    %143 = memref.load %arg3[%c8_58] : memref<16xf32, #tpu.memory_space<smem>>
    %144 = vector.broadcast %143 : f32 to vector<8x128xf32>
    %145 = arith.mulf %142, %144 : vector<8x128xf32>
    %146 = arith.addf %130, %145 : vector<8x128xf32>
    %c0_59 = arith.constant 0 : index
    %c9 = arith.constant 9 : index
    %147 = memref.load %arg1[%c0_59, %c9] : memref<2x16xf32, #tpu.memory_space<smem>>
    %148 = vector.broadcast %147 : f32 to vector<8x128xf32>
    %149 = arith.mulf %1, %148 : vector<8x128xf32>
    %c1_60 = arith.constant 1 : index
    %c9_61 = arith.constant 9 : index
    %150 = memref.load %arg1[%c1_60, %c9_61] : memref<2x16xf32, #tpu.memory_space<smem>>
    %151 = vector.broadcast %150 : f32 to vector<8x128xf32>
    %152 = arith.mulf %3, %151 : vector<8x128xf32>
    %153 = arith.addf %149, %152 : vector<8x128xf32>
    %c9_62 = arith.constant 9 : index
    %154 = memref.load %arg2[%c9_62] : memref<16xf32, #tpu.memory_space<smem>>
    %155 = vector.broadcast %154 : f32 to vector<8x128xf32>
    %156 = arith.addf %153, %155 : vector<8x128xf32>
    %cst_63 = arith.constant 0.000000e+00 : f32
    %157 = vector.broadcast %cst_63 : f32 to vector<8x128xf32>
    %158 = arith.maximumf %156, %157 : vector<8x128xf32>
    %c9_64 = arith.constant 9 : index
    %159 = memref.load %arg3[%c9_64] : memref<16xf32, #tpu.memory_space<smem>>
    %160 = vector.broadcast %159 : f32 to vector<8x128xf32>
    %161 = arith.mulf %158, %160 : vector<8x128xf32>
    %162 = arith.addf %146, %161 : vector<8x128xf32>
    %c0_65 = arith.constant 0 : index
    %c10 = arith.constant 10 : index
    %163 = memref.load %arg1[%c0_65, %c10] : memref<2x16xf32, #tpu.memory_space<smem>>
    %164 = vector.broadcast %163 : f32 to vector<8x128xf32>
    %165 = arith.mulf %1, %164 : vector<8x128xf32>
    %c1_66 = arith.constant 1 : index
    %c10_67 = arith.constant 10 : index
    %166 = memref.load %arg1[%c1_66, %c10_67] : memref<2x16xf32, #tpu.memory_space<smem>>
    %167 = vector.broadcast %166 : f32 to vector<8x128xf32>
    %168 = arith.mulf %3, %167 : vector<8x128xf32>
    %169 = arith.addf %165, %168 : vector<8x128xf32>
    %c10_68 = arith.constant 10 : index
    %170 = memref.load %arg2[%c10_68] : memref<16xf32, #tpu.memory_space<smem>>
    %171 = vector.broadcast %170 : f32 to vector<8x128xf32>
    %172 = arith.addf %169, %171 : vector<8x128xf32>
    %cst_69 = arith.constant 0.000000e+00 : f32
    %173 = vector.broadcast %cst_69 : f32 to vector<8x128xf32>
    %174 = arith.maximumf %172, %173 : vector<8x128xf32>
    %c10_70 = arith.constant 10 : index
    %175 = memref.load %arg3[%c10_70] : memref<16xf32, #tpu.memory_space<smem>>
    %176 = vector.broadcast %175 : f32 to vector<8x128xf32>
    %177 = arith.mulf %174, %176 : vector<8x128xf32>
    %178 = arith.addf %162, %177 : vector<8x128xf32>
    %c0_71 = arith.constant 0 : index
    %c11 = arith.constant 11 : index
    %179 = memref.load %arg1[%c0_71, %c11] : memref<2x16xf32, #tpu.memory_space<smem>>
    %180 = vector.broadcast %179 : f32 to vector<8x128xf32>
    %181 = arith.mulf %1, %180 : vector<8x128xf32>
    %c1_72 = arith.constant 1 : index
    %c11_73 = arith.constant 11 : index
    %182 = memref.load %arg1[%c1_72, %c11_73] : memref<2x16xf32, #tpu.memory_space<smem>>
    %183 = vector.broadcast %182 : f32 to vector<8x128xf32>
    %184 = arith.mulf %3, %183 : vector<8x128xf32>
    %185 = arith.addf %181, %184 : vector<8x128xf32>
    %c11_74 = arith.constant 11 : index
    %186 = memref.load %arg2[%c11_74] : memref<16xf32, #tpu.memory_space<smem>>
    %187 = vector.broadcast %186 : f32 to vector<8x128xf32>
    %188 = arith.addf %185, %187 : vector<8x128xf32>
    %cst_75 = arith.constant 0.000000e+00 : f32
    %189 = vector.broadcast %cst_75 : f32 to vector<8x128xf32>
    %190 = arith.maximumf %188, %189 : vector<8x128xf32>
    %c11_76 = arith.constant 11 : index
    %191 = memref.load %arg3[%c11_76] : memref<16xf32, #tpu.memory_space<smem>>
    %192 = vector.broadcast %191 : f32 to vector<8x128xf32>
    %193 = arith.mulf %190, %192 : vector<8x128xf32>
    %194 = arith.addf %178, %193 : vector<8x128xf32>
    %c0_77 = arith.constant 0 : index
    %c12 = arith.constant 12 : index
    %195 = memref.load %arg1[%c0_77, %c12] : memref<2x16xf32, #tpu.memory_space<smem>>
    %196 = vector.broadcast %195 : f32 to vector<8x128xf32>
    %197 = arith.mulf %1, %196 : vector<8x128xf32>
    %c1_78 = arith.constant 1 : index
    %c12_79 = arith.constant 12 : index
    %198 = memref.load %arg1[%c1_78, %c12_79] : memref<2x16xf32, #tpu.memory_space<smem>>
    %199 = vector.broadcast %198 : f32 to vector<8x128xf32>
    %200 = arith.mulf %3, %199 : vector<8x128xf32>
    %201 = arith.addf %197, %200 : vector<8x128xf32>
    %c12_80 = arith.constant 12 : index
    %202 = memref.load %arg2[%c12_80] : memref<16xf32, #tpu.memory_space<smem>>
    %203 = vector.broadcast %202 : f32 to vector<8x128xf32>
    %204 = arith.addf %201, %203 : vector<8x128xf32>
    %cst_81 = arith.constant 0.000000e+00 : f32
    %205 = vector.broadcast %cst_81 : f32 to vector<8x128xf32>
    %206 = arith.maximumf %204, %205 : vector<8x128xf32>
    %c12_82 = arith.constant 12 : index
    %207 = memref.load %arg3[%c12_82] : memref<16xf32, #tpu.memory_space<smem>>
    %208 = vector.broadcast %207 : f32 to vector<8x128xf32>
    %209 = arith.mulf %206, %208 : vector<8x128xf32>
    %210 = arith.addf %194, %209 : vector<8x128xf32>
    %c0_83 = arith.constant 0 : index
    %c13 = arith.constant 13 : index
    %211 = memref.load %arg1[%c0_83, %c13] : memref<2x16xf32, #tpu.memory_space<smem>>
    %212 = vector.broadcast %211 : f32 to vector<8x128xf32>
    %213 = arith.mulf %1, %212 : vector<8x128xf32>
    %c1_84 = arith.constant 1 : index
    %c13_85 = arith.constant 13 : index
    %214 = memref.load %arg1[%c1_84, %c13_85] : memref<2x16xf32, #tpu.memory_space<smem>>
    %215 = vector.broadcast %214 : f32 to vector<8x128xf32>
    %216 = arith.mulf %3, %215 : vector<8x128xf32>
    %217 = arith.addf %213, %216 : vector<8x128xf32>
    %c13_86 = arith.constant 13 : index
    %218 = memref.load %arg2[%c13_86] : memref<16xf32, #tpu.memory_space<smem>>
    %219 = vector.broadcast %218 : f32 to vector<8x128xf32>
    %220 = arith.addf %217, %219 : vector<8x128xf32>
    %cst_87 = arith.constant 0.000000e+00 : f32
    %221 = vector.broadcast %cst_87 : f32 to vector<8x128xf32>
    %222 = arith.maximumf %220, %221 : vector<8x128xf32>
    %c13_88 = arith.constant 13 : index
    %223 = memref.load %arg3[%c13_88] : memref<16xf32, #tpu.memory_space<smem>>
    %224 = vector.broadcast %223 : f32 to vector<8x128xf32>
    %225 = arith.mulf %222, %224 : vector<8x128xf32>
    %226 = arith.addf %210, %225 : vector<8x128xf32>
    %c0_89 = arith.constant 0 : index
    %c14 = arith.constant 14 : index
    %227 = memref.load %arg1[%c0_89, %c14] : memref<2x16xf32, #tpu.memory_space<smem>>
    %228 = vector.broadcast %227 : f32 to vector<8x128xf32>
    %229 = arith.mulf %1, %228 : vector<8x128xf32>
    %c1_90 = arith.constant 1 : index
    %c14_91 = arith.constant 14 : index
    %230 = memref.load %arg1[%c1_90, %c14_91] : memref<2x16xf32, #tpu.memory_space<smem>>
    %231 = vector.broadcast %230 : f32 to vector<8x128xf32>
    %232 = arith.mulf %3, %231 : vector<8x128xf32>
    %233 = arith.addf %229, %232 : vector<8x128xf32>
    %c14_92 = arith.constant 14 : index
    %234 = memref.load %arg2[%c14_92] : memref<16xf32, #tpu.memory_space<smem>>
    %235 = vector.broadcast %234 : f32 to vector<8x128xf32>
    %236 = arith.addf %233, %235 : vector<8x128xf32>
    %cst_93 = arith.constant 0.000000e+00 : f32
    %237 = vector.broadcast %cst_93 : f32 to vector<8x128xf32>
    %238 = arith.maximumf %236, %237 : vector<8x128xf32>
    %c14_94 = arith.constant 14 : index
    %239 = memref.load %arg3[%c14_94] : memref<16xf32, #tpu.memory_space<smem>>
    %240 = vector.broadcast %239 : f32 to vector<8x128xf32>
    %241 = arith.mulf %238, %240 : vector<8x128xf32>
    %242 = arith.addf %226, %241 : vector<8x128xf32>
    %c0_95 = arith.constant 0 : index
    %c15 = arith.constant 15 : index
    %243 = memref.load %arg1[%c0_95, %c15] : memref<2x16xf32, #tpu.memory_space<smem>>
    %244 = vector.broadcast %243 : f32 to vector<8x128xf32>
    %245 = arith.mulf %1, %244 : vector<8x128xf32>
    %c1_96 = arith.constant 1 : index
    %c15_97 = arith.constant 15 : index
    %246 = memref.load %arg1[%c1_96, %c15_97] : memref<2x16xf32, #tpu.memory_space<smem>>
    %247 = vector.broadcast %246 : f32 to vector<8x128xf32>
    %248 = arith.mulf %3, %247 : vector<8x128xf32>
    %249 = arith.addf %245, %248 : vector<8x128xf32>
    %c15_98 = arith.constant 15 : index
    %250 = memref.load %arg2[%c15_98] : memref<16xf32, #tpu.memory_space<smem>>
    %251 = vector.broadcast %250 : f32 to vector<8x128xf32>
    %252 = arith.addf %249, %251 : vector<8x128xf32>
    %cst_99 = arith.constant 0.000000e+00 : f32
    %253 = vector.broadcast %cst_99 : f32 to vector<8x128xf32>
    %254 = arith.maximumf %252, %253 : vector<8x128xf32>
    %c15_100 = arith.constant 15 : index
    %255 = memref.load %arg3[%c15_100] : memref<16xf32, #tpu.memory_space<smem>>
    %256 = vector.broadcast %255 : f32 to vector<8x128xf32>
    %257 = arith.mulf %254, %256 : vector<8x128xf32>
    %258 = arith.addf %242, %257 : vector<8x128xf32>
    %c0_101 = arith.constant 0 : index
    %259 = memref.load %arg4[%c0_101] : memref<1xf32, #tpu.memory_space<smem>>
    %260 = vector.broadcast %259 : f32 to vector<8x128xf32>
    %261 = arith.addf %258, %260 : vector<8x128xf32>
    %262 = arith.negf %261 : vector<8x128xf32>
    %263 = math.exp %262 : vector<8x128xf32>
    %cst_102 = arith.constant 1.000000e+00 : f32
    %264 = vector.broadcast %cst_102 : f32 to vector<8x128xf32>
    %265 = arith.addf %264, %263 : vector<8x128xf32>
    %266 = arith.divf %264, %265 : vector<8x128xf32>
    %c0_103 = arith.constant 0 : index
    %c0_104 = arith.constant 0 : index
    %267 = vector.load %arg6[%c0_103, %c0_104] : memref<8x128xf32, #tpu.memory_space<vmem>>, vector<8x128xf32>
    tpu.vector_store %arg6[%c0_103, %c0_104], %266 {strides = array<i32>} : memref<8x128xf32, #tpu.memory_space<vmem>>, vector<8x128xf32>,
    return
  }
  func.func @transform_0(%arg0: i32) -> (i32, i32) {
    %c0_i32 = arith.constant 0 : i32
    %c0_i32_0 = arith.constant 0 : i32
    %c0_i32_1 = arith.constant 0 : i32
    return %c0_i32, %c0_i32_0 : i32, i32
  }
  func.func @transform_1(%arg0: i32) -> i32 {
    %c0_i32 = arith.constant 0 : i32
    %c0_i32_0 = arith.constant 0 : i32
    return %c0_i32 : i32
  }
  func.func @transform_2(%arg0: i32) -> i32 {
    %c0_i32 = arith.constant 0 : i32
    %c0_i32_0 = arith.constant 0 : i32
    return %c0_i32 : i32
  }
  func.func @transform_3(%arg0: i32) -> i32 {
    %c0_i32 = arith.constant 0 : i32
    %c0_i32_0 = arith.constant 0 : i32
    return %c0_i32 : i32
  }
  func.func @transform_4(%arg0: i32) -> (i32, i32, i32) {
    %c0_i32 = arith.constant 0 : i32
    %c0_i32_0 = arith.constant 0 : i32
    %c0_i32_1 = arith.constant 0 : i32
    return %c0_i32, %arg0, %c0_i32_0 : i32, i32, i32
  }
  func.func @transform_5(%arg0: i32) -> (i32, i32) {
    %c0_i32 = arith.constant 0 : i32
    %c0_i32_0 = arith.constant 0 : i32
    return %arg0, %c0_i32 : i32, i32
  }
}

</mosaic_0001>

<llo_original>
// kernel: tpu_custom_call.1
$region0: #{tpu_custom_call.1}
  #allocation0 [shape = 'u32[]', space=smem, size = 0x4, offset = 0x4, fixed_abs, tag = 'smem constant byte address 0x4 - core index']
  #allocation1 [shape = 'u32[72,128]{1,0:T(1,128)}', space=vmem, size = 0x9000, scoped, tag = 'internal scratch']
  #allocation2 [shape = 'f32[1]{0:T(128)S(6)}', space=smem, size = 0x200, scoped, tag = 'scoped memory for tpu_custom_call.1']
  %s0 = inlined_call_operand.vmem [shape: f32[2,16], index: 0, kind: input, shape index: {}]
  %s1 = inlined_call_operand.hbm [shape: f32[16], index: 1, kind: input, shape index: {}]
  %s2 = inlined_call_operand.vmem [shape: f32[16], index: 2, kind: input, shape index: {}]
  %s3 = inlined_call_operand.<no memory space> [shape: f32[1], index: 3, kind: input, shape index: {}]
  %s4 = inlined_call_operand.hbm [shape: f32[2,8,128], index: 4, kind: input, shape index: {}]
  %s5 = inlined_call_operand.hbm [shape: f32[8,128], index: 5, kind: output, shape index: {}]
  %s6 = sld [smem:[#allocation0]]
  $region46: #{tpu_custom_call.1} parent=0
    _
  %s8 = ssub.s32 1, %s6
  %s9 = scalar_select 0, %s8, %s6
  %10 = sst [smem:[#allocation2]] %s3
  $region1: #{tpu_custom_call.1} parent=0
    #allocation3 [shape = 'u8[1024]{0}', space=smem, size = 0x400, scoped, tag = 'input window, operand 0, single buffered']
    #allocation4 [shape = 's32[1]{0}', space=sflag, size = 0x4, scoped, tag = 'scoped memory for tpu_custom_call.1']
    #allocation5 [shape = 's32[1]{0}', space=sflag, size = 0x4, scoped, tag = 'scoped memory for tpu_custom_call.1']
    #allocation6 [shape = 's32[1]{0}', space=sflag, size = 0x4, scoped, tag = 'scoped memory for tpu_custom_call.1']
    #allocation7 [shape = 's32[1]{0}', space=sflag, size = 0x4, scoped, tag = 'scoped memory for tpu_custom_call.1']
    #allocation8 [shape = 'u8[512]{0}', space=smem, size = 0x200, scoped, tag = 'input window, operand 1, single buffered']
    #allocation9 [shape = 'u8[512]{0}', space=smem, size = 0x200, scoped, tag = 'input window, operand 2, single buffered']
    #allocation10 [shape = 's32[1]{0}', space=sflag, size = 0x4, scoped, tag = 'scoped memory for tpu_custom_call.1']
    #allocation11 [shape = 'u8[8192]{0}', space=vmem, size = 0x2000, scoped, tag = 'input window, operand 4, single buffered']
    #allocation12 [shape = 'u8[4096]{0}', space=vmem, size = 0x1000, scoped, tag = 'output window, operand 0, single buffered']
    %11 = vsyncpa [#allocation7], 0
    %12 = vsyncpa [#allocation6], 0
    %13 = vsyncpa [#allocation10], 0
    %14 = vsyncpa [#allocation4], 0
    %15 = vsyncpa [#allocation5], 0
    // Predicated region
    $region2: #{tpu_custom_call.1} parent=1 // pred_check
      _
    $region3: #{tpu_custom_call.1} parent=1 // pred_check_branch
      %17 = sbr.rel (0) target = $region5
    $region4: #{tpu_custom_call.1} parent=1 // pred_region
      %19 = vsyncadd [#allocation7], 0
      %s21 = sshll.u32 %s0, 4
      %s22 = int_to_ptr.vmem [resolvable:$true] %s21
      %24 = dma.vmem_to_smem %s22, 32, [#allocation3], [#allocation7]
    $region5: #{tpu_custom_call.1} parent=1 // pred_fallthru
      _
    // Predicated region
    $region6: #{tpu_custom_call.1} parent=1 // pred_check
      _
    $region7: #{tpu_custom_call.1} parent=1 // pred_check_branch
      %26 = sbr.rel (0) target = $region9
    $region8: #{tpu_custom_call.1} parent=1 // pred_region
      %28 = vsyncadd [#allocation6], 0
      %s30 = sshll.u32 %s1, 4
      %s31 = int_to_ptr.hbm [resolvable:$true] %s30
      %33 = dma.hbm_to_smem %s31, 16, [#allocation8], [#allocation6]
    $region9: #{tpu_custom_call.1} parent=1 // pred_fallthru
      _
    // Predicated region
    $region10: #{tpu_custom_call.1} parent=1 // pred_check
      _
    $region11: #{tpu_custom_call.1} parent=1 // pred_check_branch
      %35 = sbr.rel (0) target = $region13
    $region12: #{tpu_custom_call.1} parent=1 // pred_region
      %37 = vsyncadd [#allocation10], 0
      %s39 = sshll.u32 %s2, 4
      %s40 = int_to_ptr.vmem [resolvable:$true] %s39
      %42 = dma.vmem_to_smem %s40, 16, [#allocation9], [#allocation10]
    $region13: #{tpu_custom_call.1} parent=1 // pred_fallthru
      _
    // Predicated region
    $region14: #{tpu_custom_call.1} parent=1 // pred_check
      _
    $region15: #{tpu_custom_call.1} parent=1 // pred_check_branch
      %44 = sbr.rel (0) target = $region17
    $region16: #{tpu_custom_call.1} parent=1 // pred_region
      _
    $region17: #{tpu_custom_call.1} parent=1 // pred_fallthru
      _
    // Predicated region
    $region18: #{tpu_custom_call.1} parent=1 // pred_check
      _
    $region19: #{tpu_custom_call.1} parent=1 // pred_check_branch
      %46 = sbr.rel (0) target = $region21
    $region20: #{tpu_custom_call.1} parent=1 // pred_region
      %48 = vsyncadd [#allocation4], 0
      %s49 = sshll.u32 %s4, 4
      %s50 = int_to_ptr.hbm [resolvable:$true] %s49
      %s51 = sshll.u32 [#allocation11], 4
      %s52 = int_to_ptr.vmem [resolvable:$true] %s51
      %57 = dma.hbm_to_vmem [thread:$0]  %s50, 256, %s52, [#allocation4], 128, 128, 8
    $region21: #{tpu_custom_call.1} parent=1 // pred_fallthru
      _
    // Predicated region
    $region22: #{tpu_custom_call.1} parent=1 // pred_check
      _
    $region23: #{tpu_custom_call.1} parent=1 // pred_check_branch
      %59 = sbr.rel (0) target = $region25
    $region24: #{tpu_custom_call.1} parent=1 // pred_region
      %61 = dma.done [#allocation7], 32
    $region25: #{tpu_custom_call.1} parent=1 // pred_fallthru
      _
    // Predicated region
    $region26: #{tpu_custom_call.1} parent=1 // pred_check
      _
    $region27: #{tpu_custom_call.1} parent=1 // pred_check_branch
      %63 = sbr.rel (0) target = $region29
    $region28: #{tpu_custom_call.1} parent=1 // pred_region
      %65 = dma.done [#allocation6], 16
    $region29: #{tpu_custom_call.1} parent=1 // pred_fallthru
      _
    // Predicated region
    $region30: #{tpu_custom_call.1} parent=1 // pred_check
      _
    $region31: #{tpu_custom_call.1} parent=1 // pred_check_branch
      %67 = sbr.rel (0) target = $region33
    $region32: #{tpu_custom_call.1} parent=1 // pred_region
      %69 = dma.done [#allocation10], 16
    $region33: #{tpu_custom_call.1} parent=1 // pred_fallthru
      _
    // Predicated region
    $region34: #{tpu_custom_call.1} parent=1 // pred_check
      _
    $region35: #{tpu_custom_call.1} parent=1 // pred_check_branch
      %71 = sbr.rel (0) target = $region37
    $region36: #{tpu_custom_call.1} parent=1 // pred_region
      %73 = dma.done [#allocation4], 256
    $region37: #{tpu_custom_call.1} parent=1 // pred_fallthru
      _
    %74 = sfence
    %v75 = vld [vmem:[#allocation11] sm:$0xff]
    %s76 = scalar_lea.vmem [#allocation11], 8
    %v77 = vld [vmem:[%s76] sm:$0xff]
    %s78 = sld [smem:[#allocation3]]
    %v79 = vstv %s78
    %v80 = vmul.f32 %v75, %v79
    %s81 = sld [smem:[#allocation3 + $0x80]]
    %v82 = vstv %s81
    %v83 = vmul.f32 %v77, %v82
    %v84 = vadd.f32 %v80, %v83
    %s85 = sld [smem:[#allocation8]]
    %v86 = vstv %s85
    %v87 = vadd.f32 %v84, %v86
    %v88 = vmax.f32 %v87, 0.0
    %s89 = sld [smem:[#allocation9]]
    %v90 = vstv %s89
    %v91 = vmul.f32 %v88, %v90
    %s92 = sld [smem:[#allocation3 + $0x1]]
    %v93 = vstv %s92
    %v94 = vmul.f32 %v75, %v93
    %s95 = sld [smem:[#allocation3 + $0x81]]
    %v96 = vstv %s95
    %v97 = vmul.f32 %v77, %v96
    %v98 = vadd.f32 %v94, %v97
    %s99 = sld [smem:[#allocation8 + $0x1]]
    %v100 = vstv %s99
    %v101 = vadd.f32 %v98, %v100
    %v102 = vmax.f32 %v101, 0.0
    %s103 = sld [smem:[#allocation9 + $0x1]]
    %v104 = vstv %s103
    %v105 = vmul.f32 %v102, %v104
    %v106 = vadd.f32 %v91, %v105
    %s107 = sld [smem:[#allocation3 + $0x2]]
    %v108 = vstv %s107
    %v109 = vmul.f32 %v75, %v108
    %s110 = sld [smem:[#allocation3 + $0x82]]
    %v111 = vstv %s110
    %v112 = vmul.f32 %v77, %v111
    %v113 = vadd.f32 %v109, %v112
    %s114 = sld [smem:[#allocation8 + $0x2]]
    %v115 = vstv %s114
    %v116 = vadd.f32 %v113, %v115
    %v117 = vmax.f32 %v116, 0.0
    %s118 = sld [smem:[#allocation9 + $0x2]]
    %v119 = vstv %s118
    %v120 = vmul.f32 %v117, %v119
    %v121 = vadd.f32 %v106, %v120
    %s122 = sld [smem:[#allocation3 + $0x3]]
    %v123 = vstv %s122
    %v124 = vmul.f32 %v75, %v123
    %s125 = sld [smem:[#allocation3 + $0x83]]
    %v126 = vstv %s125
    %v127 = vmul.f32 %v77, %v126
    %v128 = vadd.f32 %v124, %v127
    %s129 = sld [smem:[#allocation8 + $0x3]]
    %v130 = vstv %s129
    %v131 = vadd.f32 %v128, %v130
    %v132 = vmax.f32 %v131, 0.0
    %s133 = sld [smem:[#allocation9 + $0x3]]
    %v134 = vstv %s133
    %v135 = vmul.f32 %v132, %v134
    %v136 = vadd.f32 %v121, %v135
    %s137 = sld [smem:[#allocation3 + $0x4]]
    %v138 = vstv %s137
    %v139 = vmul.f32 %v75, %v138
    %s140 = sld [smem:[#allocation3 + $0x84]]
    %v141 = vstv %s140
    %v142 = vmul.f32 %v77, %v141
    %v143 = vadd.f32 %v139, %v142
    %s144 = sld [smem:[#allocation8 + $0x4]]
    %v145 = vstv %s144
    %v146 = vadd.f32 %v143, %v145
    %v147 = vmax.f32 %v146, 0.0
    %s148 = sld [smem:[#allocation9 + $0x4]]
    %v149 = vstv %s148
    %v150 = vmul.f32 %v147, %v149
    %v151 = vadd.f32 %v136, %v150
    %s152 = sld [smem:[#allocation3 + $0x5]]
    %v153 = vstv %s152
    %v154 = vmul.f32 %v75, %v153
    %s155 = sld [smem:[#allocation3 + $0x85]]
    %v156 = vstv %s155
    %v157 = vmul.f32 %v77, %v156
    %v158 = vadd.f32 %v154, %v157
    %s159 = sld [smem:[#allocation8 + $0x5]]
    %v160 = vstv %s159
    %v161 = vadd.f32 %v158, %v160
    %v162 = vmax.f32 %v161, 0.0
    %s163 = sld [smem:[#allocation9 + $0x5]]
    %v164 = vstv %s163
    %v165 = vmul.f32 %v162, %v164
    %v166 = vadd.f32 %v151, %v165
    %s167 = sld [smem:[#allocation3 + $0x6]]
    %v168 = vstv %s167
    %v169 = vmul.f32 %v75, %v168
    %s170 = sld [smem:[#allocation3 + $0x86]]
    %v171 = vstv %s170
    %v172 = vmul.f32 %v77, %v171
    %v173 = vadd.f32 %v169, %v172
    %s174 = sld [smem:[#allocation8 + $0x6]]
    %v175 = vstv %s174
    %v176 = vadd.f32 %v173, %v175
    %v177 = vmax.f32 %v176, 0.0
    %s178 = sld [smem:[#allocation9 + $0x6]]
    %v179 = vstv %s178
    %v180 = vmul.f32 %v177, %v179
    %v181 = vadd.f32 %v166, %v180
    %s182 = sld [smem:[#allocation3 + $0x7]]
    %v183 = vstv %s182
    %v184 = vmul.f32 %v75, %v183
    %s185 = sld [smem:[#allocation3 + $0x87]]
    %v186 = vstv %s185
    %v187 = vmul.f32 %v77, %v186
    %v188 = vadd.f32 %v184, %v187
    %s189 = sld [smem:[#allocation8 + $0x7]]
    %v190 = vstv %s189
    %v191 = vadd.f32 %v188, %v190
    %v192 = vmax.f32 %v191, 0.0
    %s193 = sld [smem:[#allocation9 + $0x7]]
    %v194 = vstv %s193
    %v195 = vmul.f32 %v192, %v194
    %v196 = vadd.f32 %v181, %v195
    %s197 = sld [smem:[#allocation3 + $0x8]]
    %v198 = vstv %s197
    %v199 = vmul.f32 %v75, %v198
    %s200 = sld [smem:[#allocation3 + $0x88]]
    %v201 = vstv %s200
    %v202 = vmul.f32 %v77, %v201
    %v203 = vadd.f32 %v199, %v202
    %s204 = sld [smem:[#allocation8 + $0x8]]
    %v205 = vstv %s204
    %v206 = vadd.f32 %v203, %v205
    %v207 = vmax.f32 %v206, 0.0
    %s208 = sld [smem:[#allocation9 + $0x8]]
    %v209 = vstv %s208
    %v210 = vmul.f32 %v207, %v209
    %v211 = vadd.f32 %v196, %v210
    %s212 = sld [smem:[#allocation3 + $0x9]]
    %v213 = vstv %s212
    %v214 = vmul.f32 %v75, %v213
    %s215 = sld [smem:[#allocation3 + $0x89]]
    %v216 = vstv %s215
    %v217 = vmul.f32 %v77, %v216
    %v218 = vadd.f32 %v214, %v217
    %s219 = sld [smem:[#allocation8 + $0x9]]
    %v220 = vstv %s219
    %v221 = vadd.f32 %v218, %v220
    %v222 = vmax.f32 %v221, 0.0
    %s223 = sld [smem:[#allocation9 + $0x9]]
    %v224 = vstv %s223
    %v225 = vmul.f32 %v222, %v224
    %v226 = vadd.f32 %v211, %v225
    %s227 = sld [smem:[#allocation3 + $0xa]]
    %v228 = vstv %s227
    %v229 = vmul.f32 %v75, %v228
    %s230 = sld [smem:[#allocation3 + $0x8a]]
    %v231 = vstv %s230
    %v232 = vmul.f32 %v77, %v231
    %v233 = vadd.f32 %v229, %v232
    %s234 = sld [smem:[#allocation8 + $0xa]]
    %v235 = vstv %s234
    %v236 = vadd.f32 %v233, %v235
    %v237 = vmax.f32 %v236, 0.0
    %s238 = sld [smem:[#allocation9 + $0xa]]
    %v239 = vstv %s238
    %v240 = vmul.f32 %v237, %v239
    %v241 = vadd.f32 %v226, %v240
    %s242 = sld [smem:[#allocation3 + $0xb]]
    %v243 = vstv %s242
    %v244 = vmul.f32 %v75, %v243
    %s245 = sld [smem:[#allocation3 + $0x8b]]
    %v246 = vstv %s245
    %v247 = vmul.f32 %v77, %v246
    %v248 = vadd.f32 %v244, %v247
    %s249 = sld [smem:[#allocation8 + $0xb]]
    %v250 = vstv %s249
    %v251 = vadd.f32 %v248, %v250
    %v252 = vmax.f32 %v251, 0.0
    %s253 = sld [smem:[#allocation9 + $0xb]]
    %v254 = vstv %s253
    %v255 = vmul.f32 %v252, %v254
    %v256 = vadd.f32 %v241, %v255
    %s257 = sld [smem:[#allocation3 + $0xc]]
    %v258 = vstv %s257
    %v259 = vmul.f32 %v75, %v258
    %s260 = sld [smem:[#allocation3 + $0x8c]]
    %v261 = vstv %s260
    %v262 = vmul.f32 %v77, %v261
    %v263 = vadd.f32 %v259, %v262
    %s264 = sld [smem:[#allocation8 + $0xc]]
    %v265 = vstv %s264
    %v266 = vadd.f32 %v263, %v265
    %v267 = vmax.f32 %v266, 0.0
    %s268 = sld [smem:[#allocation9 + $0xc]]
    %v269 = vstv %s268
    %v270 = vmul.f32 %v267, %v269
    %v271 = vadd.f32 %v256, %v270
    %s272 = sld [smem:[#allocation3 + $0xd]]
    %v273 = vstv %s272
    %v274 = vmul.f32 %v75, %v273
    %s275 = sld [smem:[#allocation3 + $0x8d]]
    %v276 = vstv %s275
    %v277 = vmul.f32 %v77, %v276
    %v278 = vadd.f32 %v274, %v277
    %s279 = sld [smem:[#allocation8 + $0xd]]
    %v280 = vstv %s279
    %v281 = vadd.f32 %v278, %v280
    %v282 = vmax.f32 %v281, 0.0
    %s283 = sld [smem:[#allocation9 + $0xd]]
    %v284 = vstv %s283
    %v285 = vmul.f32 %v282, %v284
    %v286 = vadd.f32 %v271, %v285
    %s287 = sld [smem:[#allocation3 + $0xe]]
    %v288 = vstv %s287
    %v289 = vmul.f32 %v75, %v288
    %s290 = sld [smem:[#allocation3 + $0x8e]]
    %v291 = vstv %s290
    %v292 = vmul.f32 %v77, %v291
    %v293 = vadd.f32 %v289, %v292
    %s294 = sld [smem:[#allocation8 + $0xe]]
    %v295 = vstv %s294
    %v296 = vadd.f32 %v293, %v295
    %v297 = vmax.f32 %v296, 0.0
    %s298 = sld [smem:[#allocation9 + $0xe]]
    %v299 = vstv %s298
    %v300 = vmul.f32 %v297, %v299
    %v301 = vadd.f32 %v286, %v300
    %s302 = sld [smem:[#allocation3 + $0xf]]
    %v303 = vstv %s302
    %v304 = vmul.f32 %v75, %v303
    %s305 = sld [smem:[#allocation3 + $0x8f]]
    %v306 = vstv %s305
    %v307 = vmul.f32 %v77, %v306
    %v308 = vadd.f32 %v304, %v307
    %s309 = sld [smem:[#allocation8 + $0xf]]
    %v310 = vstv %s309
    %v311 = vadd.f32 %v308, %v310
    %v312 = vmax.f32 %v311, 0.0
    %s313 = sld [smem:[#allocation9 + $0xf]]
    %v314 = vstv %s313
    %v315 = vmul.f32 %v312, %v314
    %v316 = vadd.f32 %v301, %v315
    %s317 = sld [smem:[#allocation2]]
    %v318 = vstv %s317
    %v319 = vadd.f32 %v316, %v318
    %v320 = vxor.u32 %v319, 2147483648
    %v321 = vmul.f32 %v320, 1.442695
    %v322 = vpow.pop %v321
    %v323 = vadd.f32 %v322, 1.0
    %v324 = vrcp.pop %v323
    %v325 = vmul.f32 %v323, %v324
    %v326 = vsub.f32 1.0, %v325
    %v327 = vmul.f32 %v324, %v326
    %v328 = vadd.f32 %v324, %v327
    %vm329 = vweird.f32 %v323
    %vm330 = vweird.f32 %v324
    %vm331 = vmor %vm329, %vm330
    %v332 = vsel %vm331, %v324, %v328
    %v333 = vand.u32 2147483647, %v323
    %vm334 = vcmp.eq.f32.partialorder %v333, 8.507059e+37
    %v335 = vand.u32 %v323, 2147483648
    %v336 = vor.u32 1.1754944e-38, %v335
    %v337 = vsel %vm334, %v336, %v332
    %v338 = vmul.f32 1.0, %v337
    %339 = vst [vmem:[#allocation12] sm:$0xff] %v338
    // Predicated region
    $region38: #{tpu_custom_call.1} parent=1 // pred_check
      _
    $region39: #{tpu_custom_call.1} parent=1 // pred_check_branch
      %341 = sbr.rel (0) target = $region41
    $region40: #{tpu_custom_call.1} parent=1 // pred_region
      %343 = vsyncadd [#allocation5], 0
      %s345 = sshll.u32 [#allocation12], 4
      %s346 = int_to_ptr.vmem [resolvable:$true] %s345
      %s347 = sshll.u32 %s5, 4
      %s348 = int_to_ptr.hbm [resolvable:$true] %s347
      %350 = dma.vmem_to_hbm [thread:$0]  %s346, 128, %s348, [#allocation5]
    $region41: #{tpu_custom_call.1} parent=1 // pred_fallthru
      _
    // Predicated region
    $region42: #{tpu_custom_call.1} parent=1 // pred_check
      _
    $region43: #{tpu_custom_call.1} parent=1 // pred_check_branch
      %352 = sbr.rel (0) target = $region45
    $region44: #{tpu_custom_call.1} parent=1 // pred_region
      %354 = dma.done [#allocation5], 128
    $region45: #{tpu_custom_call.1} parent=1 // pred_fallthru
      _
    %355 = vsyncpa [#allocation4], 1
    %356 = vsyncpa [#allocation5], 1
    %357 = vsyncpa [#allocation6], 1
    %358 = vsyncpa [#allocation7], 1
    %359 = vsyncpa [#allocation10], 1

</llo_original>
